<compile_context>
chip_gen: v5e
topology: v5e:2x2
jax: 0.10.0
libtpu: 0.0.40
codegen_flags: <defaults>
</compile_context>

<pallas_src>
import jax
import jax.numpy as jnp
from jax.experimental import pallas as pl
from jax.experimental.pallas import tpu as pltpu


# ---------------------------------------------------------------------------
# Path 1: zero-copy identity (output aliases input; no data movement at all).
# ---------------------------------------------------------------------------
def _alias_noop_kernel(x_ref, o_ref, flag_ref):
    # The output buffer is the input buffer (input_output_aliases={0: 0});
    # there is nothing to move.  A trivial SMEM write keeps the kernel body
    # non-empty so lowering never sees a fully degenerate function.
    del x_ref, o_ref
    flag_ref[0] = jnp.int32(1)


def _identity_alias(x):
    return pl.pallas_call(
        _alias_noop_kernel,
        out_shape=jax.ShapeDtypeStruct(x.shape, x.dtype),
        in_specs=[pl.BlockSpec(memory_space=pl.ANY)],   # leave input in HBM
        out_specs=pl.BlockSpec(memory_space=pl.ANY),    # output = same buffer
        scratch_shapes=[pltpu.SMEM((1,), jnp.int32)],
        input_output_aliases={0: 0},
        compiler_params=pltpu.CompilerParams(has_side_effects=True),
    )(x)


# ---------------------------------------------------------------------------
# Path 2: explicit copy via direct HBM->HBM DMAs (no VMEM staging pass).
# ---------------------------------------------------------------------------
def _make_hbm_copy_kernel(chunk_bounds):
    """Build a kernel that copies `x` to `o` with one DMA per (start, size)
    chunk along axis 0.  All chunk DMAs are started before any is waited on,
    so they are in flight concurrently."""

    def kernel(x_ref, o_ref, sems):
        copies = []
        for c, (start, size) in enumerate(chunk_bounds):
            cp = pltpu.make_async_copy(
                x_ref.at[pl.ds(start, size)],
                o_ref.at[pl.ds(start, size)],
                sems.at[c],
            )
            cp.start()
            copies.append(cp)
        for cp in copies:
            cp.wait()

    return kernel


def _identity_copy(x):
    if x.ndim == 0:
        return _identity_copy(x.reshape(1)).reshape(())

    lead = int(x.shape[0])
    n_chunks = max(1, min(4, lead))          # 2-4 concurrent DMAs is plenty
    base, rem = divmod(lead, n_chunks)
    bounds, start = [], 0
    for c in range(n_chunks):
        size = base + (1 if c < rem else 0)
        bounds.append((start, size))
        start += size

    nbytes = int(x.size) * jnp.dtype(x.dtype).itemsize
    return pl.pallas_call(
        _make_hbm_copy_kernel(tuple(bounds)),
        out_shape=jax.ShapeDtypeStruct(x.shape, x.dtype),
        in_specs=[pl.BlockSpec(memory_space=pl.ANY)],
        out_specs=pl.BlockSpec(memory_space=pl.ANY),
        scratch_shapes=[pltpu.SemaphoreType.DMA((n_chunks,))],
        cost_estimate=pl.CostEstimate(
            flops=0, transcendentals=0, bytes_accessed=2 * nbytes),
    )(x)


def _pallas_identity_module(x, *, copy=False):
    """Representative wrapped `module` for LocalDDP: the identity map.

    # TODO(synk): LocalDDP wraps an arbitrary user network (a full nnU-Net in
    # pretrain_MedMask) that is not defined by this class; the identity map is
    # used as the representative wrapped module here.
    """
    return _identity_copy(x) if copy else _identity_alias(x)


class LocalDDP:
    """JAX equivalent of the PyTorch LocalDDP wrapper: pure delegation."""

    def __init__(self, module):
        self.module = module

    def __call__(self, *args, **kwargs):
        return self.module(*args, **kwargs)

    # alias matching torch.nn.Module.forward
    def forward(self, *args, **kwargs):
        return self.module(*args, **kwargs)


if __name__ == "__main__":
    key = jax.random.PRNGKey(0)
    wrapped = LocalDDP(_pallas_identity_module)

    # Small NCHW input, consistent with what the wrapped nnU-Net would see.
    x = jax.random.normal(key, (2, 4, 16, 16), dtype=jnp.float32)

    # Default path: zero-copy aliased identity.
    y = jax.block_until_ready(wrapped(x))
    assert y.shape == x.shape and y.dtype == x.dtype
    assert bool(jnp.all(y == x))

    # Explicit-copy path: direct HBM->HBM DMA into a fresh buffer.
    y_copy = jax.block_until_ready(wrapped(x, copy=True))
    assert y_copy.shape == x.shape and y_copy.dtype == x.dtype
    assert bool(jnp.all(y_copy == x))

    # Awkward, non-128-multiple shape: handled with no padding / re-slicing
    # on either path (N-D HBM refs are aliased or DMA'd as-is).
    x_odd = jax.random.normal(jax.random.PRNGKey(1), (3, 5, 7, 11), jnp.float32)
    y_odd_alias = jax.block_until_ready(wrapped(x_odd))
    assert y_odd_alias.shape == x_odd.shape and bool(jnp.all(y_odd_alias == x_odd))
    y_odd_copy = jax.block_until_ready(wrapped(x_odd, copy=True))
    assert y_odd_copy.shape == x_odd.shape and bool(jnp.all(y_odd_copy == x_odd))

    print("KERNEL_OK")
</pallas_src>

<mosaic_0001>
module attributes {stable_mosaic.version = 11 : i64} {
  func.func @_alias_noop_kernel(%arg0: memref<2x4x16x16xf32, #tpu.memory_space<any>>, %arg1: memref<2x4x16x16xf32, #tpu.memory_space<any>>, %arg2: memref<1xi32, #tpu.memory_space<smem>>) attributes {dimension_semantics = [], scalar_prefetch = 0 : i64, scratch_operands = 1 : i64, tpu.core_type = #tpu.core_type<tc>} {
    %c1_i32 = arith.constant 1 : i32
    %c0 = arith.constant 0 : index
    %0 = memref.load %arg2[%c0] : memref<1xi32, #tpu.memory_space<smem>>
    memref.store %c1_i32, %arg2[%c0] : memref<1xi32, #tpu.memory_space<smem>>
    return
  }
}

</mosaic_0001>

<llo_original>
// kernel: tpu_custom_call.1
$region0: #{tpu_custom_call.1}
  #allocation0 [shape = 'u32[]', space=smem, size = 0x4, offset = 0x4, fixed_abs, tag = 'smem constant byte address 0x4 - core index']
  #allocation1 [shape = 'u32[72,128]{1,0:T(1,128)}', space=vmem, size = 0x9000, scoped, tag = 'internal scratch']
  #allocation2 [shape = 's32[1]{0:T(128)}', space=smem, size = 0x200, scoped, tag = 'scratch operand']
  %s0 = inlined_call_operand.hbm [shape: f32[2,4,16,16], index: 0, kind: input, shape index: {}, may-alias: {0,1}]
  %s1 = inlined_call_operand.hbm [shape: f32[2,4,16,16], index: 1, kind: output, shape index: {}, may-alias: {0,1}]
  %s2 = sld [smem:[#allocation0]]
  $region2: #{tpu_custom_call.1} parent=0
    _
  %s4 = ssub.s32 1, %s2
  %s5 = scalar_select 0, %s4, %s2
  %s6 = scalar_lea.smem [#allocation2], 0
  %7 = sst [smem:[%s6]] 1

</llo_original>
